<compile_context>
chip_gen: v7x
topology: tpu7x:2x2x1
jax: 0.10.0
libtpu: 0.0.40
codegen_flags: <defaults>
</compile_context>

<pallas_src>
import jax
import jax.numpy as jnp
from jax.experimental import pallas as pl
from jax.experimental.pallas import tpu as pltpu

# ---- static model hyper-parameters -----------------------------------------
B = 2            # batch
C_IN = 4         # cfg.num_input_channels
H = W = 16       # cfg.image_height / cfg.image_width
HW = H * W       # 256 (lane-tile aligned)
DIM_FEATS = 32   # backbone feature dim
VAR_VOCAB = 10   # cfg.var_embed_shape
VAR_DIM = 8      # cfg.var_embed_dim
NUM_CLASSES = 5  # cfg.num_classes

NORM_MEAN = 0.5  # cfg.normalization_params['mean']
NORM_SD = 0.25   # cfg.normalization_params['sd']
GEM_EPS = 1e-6
GEM_P = 3.0      # nn.Parameter(torch.ones(1)*3), frozen in eval -> trace-time constant

# dot_general dimension numbers for A^T @ B with 2-D operands (contract sublane dim of both).
_TRANS_LHS = (((0,), (0,)), ((), ()))


# ---- Pallas kernel: stem -> GeM pool -> (fused) embedding gather -> linear --
def net_kernel(var_ref,                        # SMEM (B,) int32            -- scalar prefetch
               x_ref,                          # VMEM (B, C_IN, HW)
               wstem_ref, bstem_ref,           # VMEM (D, C_IN), (D, 1)     -- norm folded in
               emb_ref,                        # VMEM (VAR_VOCAB, VAR_DIM)
               wlf_ref, wlv_ref, blin_ref,     # VMEM (D, NC), (VAR_DIM, NC), (1, NC)
               out_ref):                       # VMEM (B, NC)
    pooled_cols = []
    emb_rows = []
    for b in range(B):                         # static tiny loop, B = 2
        # backbone stem: 1x1 conv over channels (mean/sd normalization pre-folded)
        fm = jnp.dot(wstem_ref[...], x_ref[b],
                     preferred_element_type=jnp.float32)          # (D, HW), lane-dense
        # bias + ReLU + GeM clamp(eps) fused into a single vmax (eps > 0 subsumes ReLU)
        fm = jnp.maximum(fm + bstem_ref[...], GEM_EPS)
        # GeM p=3: cube on the VPU (no transcendentals on the big tensor)
        cubed = (fm * fm) * fm
        # per-sample spatial mean via lane reduction over the HW=256 tile
        pooled_cols.append(jnp.sum(cubed, axis=-1, keepdims=True) * (1.0 / HW))   # (D, 1)
        # fused embedding lookup: dynamic sublane slice of the VMEM table
        # TODO(synk): unlike nn.Embedding, an out-of-range index is not an error here.
        emb_rows.append(emb_ref[pl.ds(var_ref[b], 1), :])                          # (1, VAR_DIM)

    pooled_db = jnp.concatenate(pooled_cols, axis=1)               # (D, B) lane concat
    pooled_db = jnp.exp(jnp.log(pooled_db) * (1.0 / GEM_P))        # cube root (EUP), tiny
    emb_bv = jnp.concatenate(emb_rows, axis=0)                     # (B, VAR_DIM)

    # cat([features, var_out], 1) @ W_lin + b  ==  pooled^T @ W_feat + emb @ W_var + b,
    # produced directly in (B, NUM_CLASSES) orientation (no wrapper transpose afterwards).
    logits = jax.lax.dot_general(pooled_db, wlf_ref[...], _TRANS_LHS,
                                 preferred_element_type=jnp.float32)               # (B, NC)
    logits = logits + jnp.dot(emb_bv, wlv_ref[...], preferred_element_type=jnp.float32)
    out_ref[...] = logits + blin_ref[...]


def net_forward(x_nchw, var_idx, kparams):
    """Forward pass of Net (eval). Returns {'logits': (B, NUM_CLASSES)}."""
    b, c, h, w = x_nchw.shape
    assert (b, c, h, w) == (B, C_IN, H, W)

    # pure reshape: collapse H,W only (no batch/channel swap -> no XLA transpose op)
    x_b_c_hw = jnp.asarray(x_nchw, jnp.float32).reshape(B, C_IN, HW)

    vmem = pltpu.MemorySpace.VMEM
    grid_spec = pltpu.PrefetchScalarGridSpec(
        num_scalar_prefetch=1,          # var indices -> SMEM, gathered in-kernel
        grid=(),                        # single invocation: no tiling / pipeline bookkeeping
        in_specs=[pl.BlockSpec(memory_space=vmem)] * 7,
        out_specs=pl.BlockSpec(memory_space=vmem),
    )
    logits = pl.pallas_call(
        net_kernel,
        out_shape=jax.ShapeDtypeStruct((B, NUM_CLASSES), jnp.float32),
        grid_spec=grid_spec,
    )(jnp.asarray(var_idx, jnp.int32),          # scalar prefetch: (B,) int32
      x_b_c_hw,                                 # (B, C_IN, HW)
      kparams["w_stem_t"], kparams["b_stem_col"],
      kparams["emb"],
      kparams["w_lin_feat"], kparams["w_lin_var"], kparams["b_lin_row"])

    return {"logits": logits}                   # already (B, NUM_CLASSES)


def init_params(key):
    """PyTorch-layout parameters of the (synthetic) Net."""
    k1, k2, k3, k4, k5 = jax.random.split(key, 5)
    return {
        # backbone (1x1 conv) parameters, stored as (in, out)
        "w_stem": 0.1 * jax.random.normal(k1, (C_IN, DIM_FEATS), jnp.float32),
        "b_stem": 0.05 * jax.random.normal(k2, (1, DIM_FEATS), jnp.float32),
        # nn.Embedding(var_embed_shape, var_embed_dim)
        "embedding": 0.1 * jax.random.normal(k3, (VAR_VOCAB, VAR_DIM), jnp.float32),
        # nn.Linear(dim_feats + var_embed_dim, num_classes), stored as (in, out)
        "w_lin": 0.1 * jax.random.normal(k4, (DIM_FEATS + VAR_DIM, NUM_CLASSES), jnp.float32),
        "b_lin": 0.05 * jax.random.normal(k5, (1, NUM_CLASSES), jnp.float32),
    }


def prepare_kernel_params(params):
    """One-time transform: fold mean_sd normalization into the stem, split the linear into
    its feature / var-embedding halves, and lay everything out for the kernel."""
    w_stem = params["w_stem"]                                     # (C_IN, DIM_FEATS)
    b_stem = params["b_stem"]                                     # (1, DIM_FEATS)
    # (x - mean)/sd @ W + b  ==  x @ (W/sd) + (b - (mean/sd) * column_sum(W))
    w_eff = w_stem / NORM_SD
    b_eff = b_stem - (NORM_MEAN / NORM_SD) * jnp.sum(w_stem, axis=0, keepdims=True)
    w_lin = params["w_lin"]                                       # (D+V, NC)
    return {
        "w_stem_t": jnp.asarray(w_eff.T, jnp.float32),            # (DIM_FEATS, C_IN)
        "b_stem_col": jnp.asarray(b_eff.T, jnp.float32),          # (DIM_FEATS, 1)
        "emb": jnp.asarray(params["embedding"], jnp.float32),     # (VAR_VOCAB, VAR_DIM)
        "w_lin_feat": jnp.asarray(w_lin[:DIM_FEATS], jnp.float32),   # (DIM_FEATS, NC)
        "w_lin_var": jnp.asarray(w_lin[DIM_FEATS:], jnp.float32),    # (VAR_DIM, NC)
        "b_lin_row": jnp.asarray(params["b_lin"], jnp.float32),      # (1, NC)
    }


def net_reference(x_nchw, var_idx, params):
    """Pure-JAX reference of the same synthetic Net forward (eval mode)."""
    xn = (jnp.asarray(x_nchw, jnp.float32) - NORM_MEAN) / NORM_SD
    fm = jnp.einsum("bchw,cd->bdhw", xn, params["w_stem"]) \
        + params["b_stem"].reshape(1, DIM_FEATS, 1, 1)
    fm = jnp.maximum(fm, 0.0)                                      # backbone stem ReLU
    pooled = jnp.mean(jnp.clip(fm, GEM_EPS, None) ** GEM_P, axis=(2, 3)) ** (1.0 / GEM_P)
    emb = params["embedding"][var_idx]                             # (B, VAR_DIM)
    feats = jnp.concatenate([pooled, emb], axis=1)                 # (B, D+V)
    return feats @ params["w_lin"] + params["b_lin"]               # (B, NC)


if __name__ == "__main__":
    key = jax.random.PRNGKey(0)
    kparam, kx, kv = jax.random.split(key, 3)

    params = init_params(kparam)
    kernel_params = prepare_kernel_params(params)                  # one-time fold/split

    x = jax.random.uniform(kx, (B, C_IN, H, W), jnp.float32)       # batch['x'], NCHW
    var = jax.random.randint(kv, (B,), 0, VAR_VOCAB, jnp.int32)    # batch['var']

    out = net_forward(x, var, kernel_params)
    logits = jax.block_until_ready(out["logits"])
    ref = jax.block_until_ready(net_reference(x, var, params))

    assert logits.shape == (B, NUM_CLASSES)
    assert bool(jnp.all(jnp.isfinite(logits)))
    # loose tolerance: TPU MXU default f32 matmul precision differs between kernel & reference
    assert bool(jnp.allclose(logits, ref, rtol=5e-2, atol=5e-2)), (logits, ref)
    print("KERNEL_OK")
</pallas_src>

<mosaic_0001>
module attributes {stable_mosaic.version = 11 : i64} {
  func.func @net_kernel(%arg0: memref<2xi32, #tpu.memory_space<smem>>, %arg1: memref<2x4x256xf32, #tpu.memory_space<vmem>>, %arg2: memref<32x4xf32, #tpu.memory_space<vmem>>, %arg3: memref<32x1xf32, #tpu.memory_space<vmem>>, %arg4: memref<10x8xf32, #tpu.memory_space<vmem>>, %arg5: memref<32x5xf32, #tpu.memory_space<vmem>>, %arg6: memref<8x5xf32, #tpu.memory_space<vmem>>, %arg7: memref<1x5xf32, #tpu.memory_space<vmem>>, %arg8: memref<2x5xf32, #tpu.memory_space<vmem>>) attributes {dimension_semantics = [], scalar_prefetch = 1 : i64, scratch_operands = 0 : i64, tpu.core_type = #tpu.core_type<tc>} {
    %c0 = arith.constant 0 : index
    %c0_0 = arith.constant 0 : index
    %0 = vector.load %arg2[%c0, %c0_0] : memref<32x4xf32, #tpu.memory_space<vmem>>, vector<32x4xf32>
    %c0_1 = arith.constant 0 : index
    %c0_2 = arith.constant 0 : index
    %c0_3 = arith.constant 0 : index
    %1 = vector.load %arg1[%c0_1, %c0_2, %c0_3] : memref<2x4x256xf32, #tpu.memory_space<vmem>>, vector<1x4x256xf32>
    %2 = vector.shape_cast %1 : vector<1x4x256xf32> to vector<4x256xf32>
    %cst = arith.constant dense<0.000000e+00> : vector<32x256xf32>
    %3 = tpu.matmul %0, %2, %cst {dimension_numbers = #tpu.dot_dimension_numbers<[1], [0], [0], [1], [0, 0, 1, 1], [], []>} : vector<32x4xf32>, vector<4x256xf32>, vector<32x256xf32> -> vector<32x256xf32>
    %c0_4 = arith.constant 0 : index
    %c0_5 = arith.constant 0 : index
    %4 = vector.load %arg3[%c0_4, %c0_5] : memref<32x1xf32, #tpu.memory_space<vmem>>, vector<32x1xf32>
    %5 = vector.broadcast %4 : vector<32x1xf32> to vector<32x256xf32>
    %6 = arith.addf %3, %5 : vector<32x256xf32>
    %cst_6 = arith.constant 9.99999997E-7 : f32
    %7 = vector.broadcast %cst_6 : f32 to vector<32x256xf32>
    %8 = arith.maximumf %6, %7 : vector<32x256xf32>
    %9 = arith.mulf %8, %8 : vector<32x256xf32>
    %10 = arith.mulf %9, %8 : vector<32x256xf32>
    %cst_7 = arith.constant dense<0.000000e+00> : vector<32xf32>
    %11 = vector.multi_reduction <add>, %10, %cst_7 [1] : vector<32x256xf32> to vector<32xf32>
    %12 = vector.shape_cast %11 : vector<32xf32> to vector<32x1xf32>
    %cst_8 = arith.constant 3.906250e-03 : f32
    %13 = vector.broadcast %cst_8 : f32 to vector<32x1xf32>
    %14 = arith.mulf %12, %13 : vector<32x1xf32>
    %c0_9 = arith.constant 0 : index
    %15 = memref.load %arg0[%c0_9] : memref<2xi32, #tpu.memory_space<smem>>
    %16 = arith.index_cast %15 : i32 to index
    %c0_10 = arith.constant 0 : index
    %17 = vector.load %arg4[%16, %c0_10] : memref<10x8xf32, #tpu.memory_space<vmem>>, vector<1x8xf32>
    %c0_11 = arith.constant 0 : index
    %c0_12 = arith.constant 0 : index
    %18 = vector.load %arg2[%c0_11, %c0_12] : memref<32x4xf32, #tpu.memory_space<vmem>>, vector<32x4xf32>
    %c1 = arith.constant 1 : index
    %c0_13 = arith.constant 0 : index
    %c0_14 = arith.constant 0 : index
    %19 = vector.load %arg1[%c1, %c0_13, %c0_14] : memref<2x4x256xf32, #tpu.memory_space<vmem>>, vector<1x4x256xf32>
    %20 = vector.shape_cast %19 : vector<1x4x256xf32> to vector<4x256xf32>
    %cst_15 = arith.constant dense<0.000000e+00> : vector<32x256xf32>
    %21 = tpu.matmul %18, %20, %cst_15 {dimension_numbers = #tpu.dot_dimension_numbers<[1], [0], [0], [1], [0, 0, 1, 1], [], []>} : vector<32x4xf32>, vector<4x256xf32>, vector<32x256xf32> -> vector<32x256xf32>
    %c0_16 = arith.constant 0 : index
    %c0_17 = arith.constant 0 : index
    %22 = vector.load %arg3[%c0_16, %c0_17] : memref<32x1xf32, #tpu.memory_space<vmem>>, vector<32x1xf32>
    %23 = vector.broadcast %22 : vector<32x1xf32> to vector<32x256xf32>
    %24 = arith.addf %21, %23 : vector<32x256xf32>
    %cst_18 = arith.constant 9.99999997E-7 : f32
    %25 = vector.broadcast %cst_18 : f32 to vector<32x256xf32>
    %26 = arith.maximumf %24, %25 : vector<32x256xf32>
    %27 = arith.mulf %26, %26 : vector<32x256xf32>
    %28 = arith.mulf %27, %26 : vector<32x256xf32>
    %cst_19 = arith.constant dense<0.000000e+00> : vector<32xf32>
    %29 = vector.multi_reduction <add>, %28, %cst_19 [1] : vector<32x256xf32> to vector<32xf32>
    %30 = vector.shape_cast %29 : vector<32xf32> to vector<32x1xf32>
    %cst_20 = arith.constant 3.906250e-03 : f32
    %31 = vector.broadcast %cst_20 : f32 to vector<32x1xf32>
    %32 = arith.mulf %30, %31 : vector<32x1xf32>
    %c1_21 = arith.constant 1 : index
    %33 = memref.load %arg0[%c1_21] : memref<2xi32, #tpu.memory_space<smem>>
    %34 = arith.index_cast %33 : i32 to index
    %c0_22 = arith.constant 0 : index
    %35 = vector.load %arg4[%34, %c0_22] : memref<10x8xf32, #tpu.memory_space<vmem>>, vector<1x8xf32>
    %36 = tpu.concatenate %14, %32 in 1 : vector<32x1xf32>, vector<32x1xf32> -> vector<32x2xf32>
    %37 = math.log %36 : vector<32x2xf32>
    %cst_23 = arith.constant 0.333333343 : f32
    %38 = vector.broadcast %cst_23 : f32 to vector<32x2xf32>
    %39 = arith.mulf %37, %38 : vector<32x2xf32>
    %40 = math.exp %39 : vector<32x2xf32>
    %41 = tpu.concatenate %17, %35 in 0 : vector<1x8xf32>, vector<1x8xf32> -> vector<2x8xf32>
    %c0_24 = arith.constant 0 : index
    %c0_25 = arith.constant 0 : index
    %42 = vector.load %arg5[%c0_24, %c0_25] : memref<32x5xf32, #tpu.memory_space<vmem>>, vector<32x5xf32>
    %cst_26 = arith.constant dense<0.000000e+00> : vector<2x5xf32>
    %43 = tpu.matmul %40, %42, %cst_26 {dimension_numbers = #tpu.dot_dimension_numbers<[0], [0], [1], [1], [0, 1, 1, 1], [], []>} : vector<32x2xf32>, vector<32x5xf32>, vector<2x5xf32> -> vector<2x5xf32>
    %c0_27 = arith.constant 0 : index
    %c0_28 = arith.constant 0 : index
    %44 = vector.load %arg6[%c0_27, %c0_28] : memref<8x5xf32, #tpu.memory_space<vmem>>, vector<8x5xf32>
    %cst_29 = arith.constant dense<0.000000e+00> : vector<2x5xf32>
    %45 = tpu.matmul %41, %44, %cst_29 {dimension_numbers = #tpu.dot_dimension_numbers<[1], [0], [0], [1], [0, 0, 1, 1], [], []>} : vector<2x8xf32>, vector<8x5xf32>, vector<2x5xf32> -> vector<2x5xf32>
    %46 = arith.addf %43, %45 : vector<2x5xf32>
    %c0_30 = arith.constant 0 : index
    %c0_31 = arith.constant 0 : index
    %47 = vector.load %arg7[%c0_30, %c0_31] : memref<1x5xf32, #tpu.memory_space<vmem>>, vector<1x5xf32>
    %48 = vector.broadcast %47 : vector<1x5xf32> to vector<2x5xf32>
    %49 = arith.addf %46, %48 : vector<2x5xf32>
    %c0_32 = arith.constant 0 : index
    %c0_33 = arith.constant 0 : index
    %50 = vector.load %arg8[%c0_32, %c0_33] : memref<2x5xf32, #tpu.memory_space<vmem>>, vector<2x5xf32>
    tpu.vector_store %arg8[%c0_32, %c0_33], %49 {strides = array<i32>} : memref<2x5xf32, #tpu.memory_space<vmem>>, vector<2x5xf32>,
    return
  }
}

</mosaic_0001>

<llo_original>
// kernel: tpu_custom_call.1
$region0: #{tpu_custom_call.1}
  #allocation0 [shape = 'u32[]', space=smem, size = 0x4, offset = 0x4, fixed_abs, tag = 'smem constant byte address 0x4 - core index']
  #allocation1 [shape = 'u32[144,128]{1,0:T(1,128)}', space=vmem, size = 0x12000, scoped, tag = 'internal scratch']
  #allocation2 [shape = 's32[1]{0}', space=sflag, size = 0x4, scoped, tag = 'scoped memory for tpu_custom_call.1']
  #allocation3 [shape = 'u8[512]{0}', space=smem, size = 0x200, scoped, tag = 'prefetched SMEM operand 0']
  %s0 = inlined_call_operand.vmem [shape: s32[2], index: 0, kind: input, shape index: {}]
  %s1 = inlined_call_operand.vmem [shape: f32[2,4,256], index: 1, kind: input, shape index: {}]
  %s2 = inlined_call_operand.vmem [shape: f32[32,4], index: 2, kind: input, shape index: {}]
  %s3 = inlined_call_operand.vmem [shape: f32[32,1], index: 3, kind: input, shape index: {}]
  %s4 = inlined_call_operand.vmem [shape: f32[10,8], index: 4, kind: input, shape index: {}]
  %s5 = inlined_call_operand.vmem [shape: f32[32,5], index: 5, kind: input, shape index: {}]
  %s6 = inlined_call_operand.vmem [shape: f32[8,5], index: 6, kind: input, shape index: {}]
  %s7 = inlined_call_operand.vmem [shape: f32[1,5], index: 7, kind: input, shape index: {}]
  %s8 = inlined_call_operand.hbm [shape: f32[2,5], index: 8, kind: output, shape index: {}]
  %s9 = sld [smem:[#allocation0]]
  $region38: #{tpu_custom_call.1} parent=0
    _
  %s11 = ssub.s32 1, %s9
  %s12 = scalar_select 0, %s11, %s9
  %s13 = sshll.u32 %s0, 4
  %s14 = int_to_ptr.vmem [resolvable:$true] %s13
  %16 = dma.vmem_to_smem %s14, 16, [#allocation3], [#allocation2]
  %17 = dma.done [#allocation2], 16
  %18 = sfence
  $region1: #{tpu_custom_call.1} parent=0
    #allocation4 [shape = 'u8[1024]{0}', space=vmem, size = 0x400, scoped, tag = 'output window, operand 0, single buffered']
    #allocation5 [shape = 's32[1]{0}', space=sflag, size = 0x4, scoped, tag = 'scoped memory for tpu_custom_call.1']
    %19 = vsyncpa [#allocation5], 0
    // Predicated region
    $region2: #{tpu_custom_call.1} parent=1 // pred_check
      _
    $region3: #{tpu_custom_call.1} parent=1 // pred_check_branch
      %21 = sbr.rel (0) target = $region5
    $region4: #{tpu_custom_call.1} parent=1 // pred_region
      _
    $region5: #{tpu_custom_call.1} parent=1 // pred_fallthru
      _
    // Predicated region
    $region6: #{tpu_custom_call.1} parent=1 // pred_check
      _
    $region7: #{tpu_custom_call.1} parent=1 // pred_check_branch
      %23 = sbr.rel (0) target = $region9
    $region8: #{tpu_custom_call.1} parent=1 // pred_region
      _
    $region9: #{tpu_custom_call.1} parent=1 // pred_fallthru
      _
    // Predicated region
    $region10: #{tpu_custom_call.1} parent=1 // pred_check
      _
    $region11: #{tpu_custom_call.1} parent=1 // pred_check_branch
      %25 = sbr.rel (0) target = $region13
    $region12: #{tpu_custom_call.1} parent=1 // pred_region
      _
    $region13: #{tpu_custom_call.1} parent=1 // pred_fallthru
      _
    // Predicated region
    $region14: #{tpu_custom_call.1} parent=1 // pred_check
      _
    $region15: #{tpu_custom_call.1} parent=1 // pred_check_branch
      %27 = sbr.rel (0) target = $region17
    $region16: #{tpu_custom_call.1} parent=1 // pred_region
      _
    $region17: #{tpu_custom_call.1} parent=1 // pred_fallthru
      _
    // Predicated region
    $region18: #{tpu_custom_call.1} parent=1 // pred_check
      _
    $region19: #{tpu_custom_call.1} parent=1 // pred_check_branch
      %29 = sbr.rel (0) target = $region21
    $region20: #{tpu_custom_call.1} parent=1 // pred_region
      _
    $region21: #{tpu_custom_call.1} parent=1 // pred_fallthru
      _
    // Predicated region
    $region22: #{tpu_custom_call.1} parent=1 // pred_check
      _
    $region23: #{tpu_custom_call.1} parent=1 // pred_check_branch
      %31 = sbr.rel (0) target = $region25
    $region24: #{tpu_custom_call.1} parent=1 // pred_region
      _
    $region25: #{tpu_custom_call.1} parent=1 // pred_fallthru
      _
    // Predicated region
    $region26: #{tpu_custom_call.1} parent=1 // pred_check
      _
    $region27: #{tpu_custom_call.1} parent=1 // pred_check_branch
      %33 = sbr.rel (0) target = $region29
    $region28: #{tpu_custom_call.1} parent=1 // pred_region
      _
    $region29: #{tpu_custom_call.1} parent=1 // pred_fallthru
      _
    %v34 = vld [vmem:[%s2] sm:$0xff]
    %v35 = vld [vmem:[%s2 + $0x8] sm:$0xff]
    %v36 = vld [vmem:[%s2 + $0x10] sm:$0xff]
    %v37 = vld [vmem:[%s2 + $0x18] sm:$0xff]
    %v38 = vld [vmem:[%s1] sm:$0xff]
    %v39 = vld [vmem:[%s3] sm:$0xff]
    %v40 = vld [vmem:[%s3 + $0x8] sm:$0xff]
    %v41 = vld [vmem:[%s3 + $0x10] sm:$0xff]
    %v42 = vld [vmem:[%s3 + $0x18] sm:$0xff]
    %44 = vset.pattern.permute.xlu0 0
    %45 = vperm.xlu0 %44, %v39
    %v46 = vpop.permute.xlu0 %45
    %49 = vset.pattern.permute.xlu0 0
    %50 = vperm.xlu0 %49, %v40
    %v51 = vpop.permute.xlu0 %50
    %54 = vset.pattern.permute.xlu0 0
    %55 = vperm.xlu0 %54, %v41
    %v56 = vpop.permute.xlu0 %55
    %59 = vset.pattern.permute.xlu0 0
    %60 = vperm.xlu0 %59, %v42
    %v61 = vpop.permute.xlu0 %60
    %v64 = vcombine.high %v38, %v38
    %vm65 = vcmask 31744
    %v67 = vsel %vm65, %v34, 0
    %v70 = vsel %vm65, %v35, 0
    %v73 = vsel %vm65, %v36, 0
    %v76 = vsel %vm65, %v37, 0
    %vm78 = vcmask 1043456
    %v79 = vsel %vm78, %v38, 0
    %v81 = vsel %vm78, %v64, 0
    %83 = vmatprep.subr.mxu0 %v81
    %84 = vmatpush1.msra.mxu0 %v79
    %85 = vmatprep.subr.mxu0 0.0
    %86 = vmatpush1.msra.mxu0 0.0
    %87 = vmatprep.subr.mxu0 0.0
    %88 = vmatpush1.msra.mxu0 0.0
    %89 = vmatprep.subr.mxu0 0.0
    %90 = vmatpush1.msra.mxu0 0.0
    %91 = vmatprep.subr.mxu0 0.0
    %92 = vmatpush1.msra.mxu0 0.0
    %93 = vmatprep.subr.mxu0 0.0
    %94 = vmatpush1.msra.mxu0 0.0
    %95 = vmatprep.subr.mxu0 0.0
    %96 = vmatpush1.msra.mxu0 0.0
    %97 = vmatprep.subr.mxu0 0.0
    %98 = vmatpush1.msra.mxu0 0.0
    %99 = vmatprep.subr.mxu0 0.0
    %100 = vmatpush1.msra.mxu0 0.0
    %101 = vmatprep.subr.mxu0 0.0
    %102 = vmatpush1.msra.mxu0 0.0
    %103 = vmatprep.subr.mxu0 0.0
    %104 = vmatpush1.msra.mxu0 0.0
    %105 = vmatprep.subr.mxu0 0.0
    %106 = vmatpush1.msra.mxu0 0.0
    %107 = vmatprep.subr.mxu0 0.0
    %108 = vmatpush1.msra.mxu0 0.0
    %109 = vmatprep.subr.mxu0 0.0
    %110 = vmatpush1.msra.mxu0 0.0
    %111 = vmatprep.subr.mxu0 0.0
    %112 = vmatpush1.msra.mxu0 0.0
    %113 = vmatprep.subr.mxu0 0.0
    %114 = vmatpush1.msra.mxu0 0.0
    %115 = vmatprep.subr.mxu0 0.0
    %116 = vmatpush1.msra.mxu0 0.0
    %117 = vmatprep.subr.mxu0 0.0
    %118 = vmatpush1.msra.mxu0 0.0
    %119 = vmatprep.subr.mxu0 0.0
    %120 = vmatpush1.msra.mxu0 0.0
    %121 = vmatprep.subr.mxu0 0.0
    %122 = vmatpush1.msra.mxu0 0.0
    %123 = vmatprep.subr.mxu0 0.0
    %124 = vmatpush1.msra.mxu0 0.0
    %125 = vmatprep.subr.mxu0 0.0
    %126 = vmatpush1.msra.mxu0 0.0
    %127 = vmatprep.subr.mxu0 0.0
    %128 = vmatpush1.msra.mxu0 0.0
    %129 = vmatprep.subr.mxu0 0.0
    %130 = vmatpush1.msra.mxu0 0.0
    %131 = vmatprep.subr.mxu0 0.0
    %132 = vmatpush1.msra.mxu0 0.0
    %133 = vmatprep.subr.mxu0 0.0
    %134 = vmatpush1.msra.mxu0 0.0
    %135 = vmatprep.subr.mxu0 0.0
    %136 = vmatpush1.msra.mxu0 0.0
    %137 = vmatprep.subr.mxu0 0.0
    %138 = vmatpush1.msra.mxu0 0.0
    %139 = vmatprep.subr.mxu0 0.0
    %140 = vmatpush1.msra.mxu0 0.0
    %141 = vmatprep.subr.mxu0 0.0
    %142 = vmatpush1.msra.mxu0 0.0
    %143 = vmatprep.subr.mxu0 0.0
    %144 = vmatpush1.msra.mxu0 0.0
    %145 = vmatprep.subr.mxu0 0.0
    %146 = vmatpush1.msra.mxu0 0.0
    %147 = vmatprep.mubr.f32.mxu0 0.0
    %148 = vmatmul.mubr.f32.gmra.mrb[0].mxu0 %v67
    %v149 = vpop.f32.mrb[0].mxu0
    %v150 = vadd.f32 %v46, %v149
    %v151 = vpop.f32.mrb[0].mxu0
    %v152 = vadd.f32 %v46, %v151
    %153 = vmatprep.mubr.f32.mxu0 0.0
    %154 = vmatmul.mubr.f32.gmra.mrb[0].mxu0 %v70
    %v155 = vpop.f32.mrb[0].mxu0
    %v156 = vadd.f32 %v51, %v155
    %v157 = vpop.f32.mrb[0].mxu0
    %v158 = vadd.f32 %v51, %v157
    %159 = vmatprep.mubr.f32.mxu0 0.0
    %160 = vmatmul.mubr.f32.gmra.mrb[0].mxu0 %v73
    %v161 = vpop.f32.mrb[0].mxu0
    %v162 = vadd.f32 %v56, %v161
    %v163 = vpop.f32.mrb[0].mxu0
    %v164 = vadd.f32 %v56, %v163
    %165 = vmatprep.mubr.f32.mxu0 0.0
    %166 = vmatmul.mubr.f32.gmra.mrb[0].mxu0 %v76
    %v167 = vpop.f32.mrb[0].mxu0
    %v168 = vadd.f32 %v61, %v167
    %v169 = vpop.f32.mrb[0].mxu0
    %v170 = vadd.f32 %v61, %v169
    %171 = vdwg.mxu0
    %v172 = vmax.f32 %v150, 1e-06
    %v173 = vmax.f32 %v152, 1e-06
    %v174 = vmax.f32 %v156, 1e-06
    %v175 = vmax.f32 %v158, 1e-06
    %v176 = vmax.f32 %v162, 1e-06
    %v177 = vmax.f32 %v164, 1e-06
    %v178 = vmax.f32 %v168, 1e-06
    %v179 = vmax.f32 %v170, 1e-06
    %v180 = vmul.f32 %v172, %v172
    %v181 = vmul.f32 %v173, %v173
    %v182 = vmul.f32 %v174, %v174
    %v183 = vmul.f32 %v175, %v175
    %v184 = vmul.f32 %v176, %v176
    %v185 = vmul.f32 %v177, %v177
    %v186 = vmul.f32 %v178, %v178
    %v187 = vmul.f32 %v179, %v179
    %v188 = vmul.f32 %v180, %v172
    %v189 = vmul.f32 %v181, %v173
    %v190 = vmul.f32 %v182, %v174
    %v191 = vmul.f32 %v183, %v175
    %v192 = vmul.f32 %v184, %v176
    %v193 = vmul.f32 %v185, %v177
    %v194 = vmul.f32 %v186, %v178
    %v195 = vmul.f32 %v187, %v179
    %v196 = vadd.f32 %v188, %v189
    %197 = vadd.xlane.f32.xlu0 %v196
    %v198 = vpop.xlane.xlu0 %197
    %v199 = vadd.f32 %v190, %v191
    %200 = vadd.xlane.f32.xlu0 %v199
    %v201 = vpop.xlane.xlu0 %200
    %v202 = vadd.f32 %v192, %v193
    %203 = vadd.xlane.f32.xlu0 %v202
    %v204 = vpop.xlane.xlu0 %203
    %v205 = vadd.f32 %v194, %v195
    %206 = vadd.xlane.f32.xlu0 %v205
    %v207 = vpop.xlane.xlu0 %206
    %v208 = vmul.f32 %v198, 0.00390625
    %v209 = vmul.f32 %v201, 0.00390625
    %v210 = vmul.f32 %v204, 0.00390625
    %v211 = vmul.f32 %v207, 0.00390625
    %s212 = sld [smem:[#allocation3]]
    %s213 = scalar_lea.vmem %s4, %s212
    %v214 = vld [vmem:[%s213] sm:$0x1]
    %s215 = scalar_lea.vmem %s1, 8
    %v216 = vld [vmem:[%s215] sm:$0xff]
    %v218 = vcombine.high %v216, %v216
    %v219 = vsel %vm78, %v216, 0
    %v221 = vsel %vm78, %v218, 0
    %223 = vmatprep.subr.mxu0 %v221
    %224 = vmatpush1.msra.mxu0 %v219
    %225 = vmatprep.subr.mxu0 0.0
    %226 = vmatpush1.msra.mxu0 0.0
    %227 = vmatprep.subr.mxu0 0.0
    %228 = vmatpush1.msra.mxu0 0.0
    %229 = vmatprep.subr.mxu0 0.0
    %230 = vmatpush1.msra.mxu0 0.0
    %231 = vmatprep.subr.mxu0 0.0
    %232 = vmatpush1.msra.mxu0 0.0
    %233 = vmatprep.subr.mxu0 0.0
    %234 = vmatpush1.msra.mxu0 0.0
    %235 = vmatprep.subr.mxu0 0.0
    %236 = vmatpush1.msra.mxu0 0.0
    %237 = vmatprep.subr.mxu0 0.0
    %238 = vmatpush1.msra.mxu0 0.0
    %239 = vmatprep.subr.mxu0 0.0
    %240 = vmatpush1.msra.mxu0 0.0
    %241 = vmatprep.subr.mxu0 0.0
    %242 = vmatpush1.msra.mxu0 0.0
    %243 = vmatprep.subr.mxu0 0.0
    %244 = vmatpush1.msra.mxu0 0.0
    %245 = vmatprep.subr.mxu0 0.0
    %246 = vmatpush1.msra.mxu0 0.0
    %247 = vmatprep.subr.mxu0 0.0
    %248 = vmatpush1.msra.mxu0 0.0
    %249 = vmatprep.subr.mxu0 0.0
    %250 = vmatpush1.msra.mxu0 0.0
    %251 = vmatprep.subr.mxu0 0.0
    %252 = vmatpush1.msra.mxu0 0.0
    %253 = vmatprep.subr.mxu0 0.0
    %254 = vmatpush1.msra.mxu0 0.0
    %255 = vmatprep.subr.mxu0 0.0
    %256 = vmatpush1.msra.mxu0 0.0
    %257 = vmatprep.subr.mxu0 0.0
    %258 = vmatpush1.msra.mxu0 0.0
    %259 = vmatprep.subr.mxu0 0.0
    %260 = vmatpush1.msra.mxu0 0.0
    %261 = vmatprep.subr.mxu0 0.0
    %262 = vmatpush1.msra.mxu0 0.0
    %263 = vmatprep.subr.mxu0 0.0
    %264 = vmatpush1.msra.mxu0 0.0
    %265 = vmatprep.subr.mxu0 0.0
    %266 = vmatpush1.msra.mxu0 0.0
    %267 = vmatprep.subr.mxu0 0.0
    %268 = vmatpush1.msra.mxu0 0.0
    %269 = vmatprep.subr.mxu0 0.0
    %270 = vmatpush1.msra.mxu0 0.0
    %271 = vmatprep.subr.mxu0 0.0
    %272 = vmatpush1.msra.mxu0 0.0
    %273 = vmatprep.subr.mxu0 0.0
    %274 = vmatpush1.msra.mxu0 0.0
    %275 = vmatprep.subr.mxu0 0.0
    %276 = vmatpush1.msra.mxu0 0.0
    %277 = vmatprep.subr.mxu0 0.0
    %278 = vmatpush1.msra.mxu0 0.0
    %279 = vmatprep.subr.mxu0 0.0
    %280 = vmatpush1.msra.mxu0 0.0
    %281 = vmatprep.subr.mxu0 0.0
    %282 = vmatpush1.msra.mxu0 0.0
    %283 = vmatprep.subr.mxu0 0.0
    %284 = vmatpush1.msra.mxu0 0.0
    %285 = vmatprep.subr.mxu0 0.0
    %286 = vmatpush1.msra.mxu0 0.0
    %287 = vmatprep.mubr.f32.mxu0 0.0
    %288 = vmatmul.mubr.f32.gmra.mrb[0].mxu0 %v67
    %v289 = vpop.f32.mrb[0].mxu0
    %v290 = vadd.f32 %v46, %v289
    %v291 = vpop.f32.mrb[0].mxu0
    %v292 = vadd.f32 %v46, %v291
    %293 = vmatprep.mubr.f32.mxu0 0.0
    %294 = vmatmul.mubr.f32.gmra.mrb[0].mxu0 %v70
    %v295 = vpop.f32.mrb[0].mxu0
    %v296 = vadd.f32 %v51, %v295
    %v297 = vpop.f32.mrb[0].mxu0
    %v298 = vadd.f32 %v51, %v297
    %299 = vmatprep.mubr.f32.mxu0 0.0
    %300 = vmatmul.mubr.f32.gmra.mrb[0].mxu0 %v73
    %v301 = vpop.f32.mrb[0].mxu0
    %v302 = vadd.f32 %v56, %v301
    %v303 = vpop.f32.mrb[0].mxu0
    %v304 = vadd.f32 %v56, %v303
    %305 = vmatprep.mubr.f32.mxu0 0.0
    %306 = vmatmul.mubr.f32.gmra.mrb[0].mxu0 %v76
    %v307 = vpop.f32.mrb[0].mxu0
    %v308 = vadd.f32 %v61, %v307
    %v309 = vpop.f32.mrb[0].mxu0
    %v310 = vadd.f32 %v61, %v309
    %311 = vdwg.mxu0
    %v312 = vmax.f32 %v290, 1e-06
    %v313 = vmax.f32 %v292, 1e-06
    %v314 = vmax.f32 %v296, 1e-06
    %v315 = vmax.f32 %v298, 1e-06
    %v316 = vmax.f32 %v302, 1e-06
    %v317 = vmax.f32 %v304, 1e-06
    %v318 = vmax.f32 %v308, 1e-06
    %v319 = vmax.f32 %v310, 1e-06
    %v320 = vmul.f32 %v312, %v312
    %v321 = vmul.f32 %v313, %v313
    %v322 = vmul.f32 %v314, %v314
    %v323 = vmul.f32 %v315, %v315
    %v324 = vmul.f32 %v316, %v316
    %v325 = vmul.f32 %v317, %v317
    %v326 = vmul.f32 %v318, %v318
    %v327 = vmul.f32 %v319, %v319
    %v328 = vmul.f32 %v320, %v312
    %v329 = vmul.f32 %v321, %v313
    %v330 = vmul.f32 %v322, %v314
    %v331 = vmul.f32 %v323, %v315
    %v332 = vmul.f32 %v324, %v316
    %v333 = vmul.f32 %v325, %v317
    %v334 = vmul.f32 %v326, %v318
    %v335 = vmul.f32 %v327, %v319
    %v336 = vadd.f32 %v328, %v329
    %337 = vadd.xlane.f32.xlu0 %v336
    %v338 = vpop.xlane.xlu0 %337
    %v339 = vadd.f32 %v330, %v331
    %340 = vadd.xlane.f32.xlu0 %v339
    %v341 = vpop.xlane.xlu0 %340
    %v342 = vadd.f32 %v332, %v333
    %343 = vadd.xlane.f32.xlu0 %v342
    %v344 = vpop.xlane.xlu0 %343
    %v345 = vadd.f32 %v334, %v335
    %346 = vadd.xlane.f32.xlu0 %v345
    %v347 = vpop.xlane.xlu0 %346
    %v348 = vmul.f32 %v338, 0.00390625
    %v349 = vmul.f32 %v341, 0.00390625
    %v350 = vmul.f32 %v344, 0.00390625
    %v351 = vmul.f32 %v347, 0.00390625
    %s352 = sld [smem:[#allocation3 + $0x1]]
    %s353 = scalar_lea.vmem %s4, %s352
    %v354 = vld [vmem:[%s353] sm:$0x1]
    %vm355 = vcmask 7168
    %v356 = vsel %vm355, %v208, %v348
    %v357 = vsel %vm355, %v209, %v349
    %v358 = vsel %vm355, %v210, %v350
    %v359 = vsel %vm355, %v211, %v351
    %v360 = vlog2.pop %v356
    %v361 = vmul.f32 %v360, 0.6931472
    %v362 = vlog2.pop %v357
    %v363 = vmul.f32 %v362, 0.6931472
    %v364 = vlog2.pop %v358
    %v365 = vmul.f32 %v364, 0.6931472
    %v366 = vlog2.pop %v359
    %v367 = vmul.f32 %v366, 0.6931472
    %v368 = vmul.f32 %v361, 0.33333334
    %v369 = vmul.f32 %v363, 0.33333334
    %v370 = vmul.f32 %v365, 0.33333334
    %v371 = vmul.f32 %v367, 0.33333334
    %v372 = vmul.f32 %v368, 1.442695
    %v373 = vpow.pop %v372
    %v374 = vmul.f32 %v369, 1.442695
    %v375 = vpow.pop %v374
    %v376 = vmul.f32 %v370, 1.442695
    %v377 = vpow.pop %v376
    %v378 = vmul.f32 %v371, 1.442695
    %v379 = vpow.pop %v378
    %v381 = vrot.slane %v354, 7
    %vm383 = vcmask 1040384
    %v384 = vsel %vm383, %v214, %v381
    %v385 = vld [vmem:[%s5] sm:$0xff]
    %v386 = vld [vmem:[%s5 + $0x8] sm:$0xff]
    %v387 = vld [vmem:[%s5 + $0x10] sm:$0xff]
    %v388 = vld [vmem:[%s5 + $0x18] sm:$0xff]
    %v389 = vld [vmem:[%s6] sm:$0xff]
    %vm390 = vcmask 64512
    %v392 = vsel %vm390, %v384, 0
    %394 = vmatprep.subr.mxu0 0.0
    %395 = vmatpush1.msra.mxu0 %v389
    %396 = vmatprep.subr.mxu0 0.0
    %397 = vmatpush1.msra.mxu0 0.0
    %398 = vmatprep.subr.mxu0 0.0
    %399 = vmatpush1.msra.mxu0 0.0
    %400 = vmatprep.subr.mxu0 0.0
    %401 = vmatpush1.msra.mxu0 0.0
    %402 = vmatprep.subr.mxu0 0.0
    %403 = vmatpush1.msra.mxu0 0.0
    %404 = vmatprep.subr.mxu0 0.0
    %405 = vmatpush1.msra.mxu0 0.0
    %406 = vmatprep.subr.mxu0 0.0
    %407 = vmatpush1.msra.mxu0 0.0
    %408 = vmatprep.subr.mxu0 0.0
    %409 = vmatpush1.msra.mxu0 0.0
    %410 = vmatprep.subr.mxu0 0.0
    %411 = vmatpush1.msra.mxu0 0.0
    %412 = vmatprep.subr.mxu0 0.0
    %413 = vmatpush1.msra.mxu0 0.0
    %414 = vmatprep.subr.mxu0 0.0
    %415 = vmatpush1.msra.mxu0 0.0
    %416 = vmatprep.subr.mxu0 0.0
    %417 = vmatpush1.msra.mxu0 0.0
    %418 = vmatprep.subr.mxu0 0.0
    %419 = vmatpush1.msra.mxu0 0.0
    %420 = vmatprep.subr.mxu0 0.0
    %421 = vmatpush1.msra.mxu0 0.0
    %422 = vmatprep.subr.mxu0 0.0
    %423 = vmatpush1.msra.mxu0 0.0
    %424 = vmatprep.subr.mxu0 0.0
    %425 = vmatpush1.msra.mxu0 0.0
    %426 = vmatprep.subr.mxu0 0.0
    %427 = vmatpush1.msra.mxu0 0.0
    %428 = vmatprep.subr.mxu0 0.0
    %429 = vmatpush1.msra.mxu0 0.0
    %430 = vmatprep.subr.mxu0 0.0
    %431 = vmatpush1.msra.mxu0 0.0
    %432 = vmatprep.subr.mxu0 0.0
    %433 = vmatpush1.msra.mxu0 0.0
    %434 = vmatprep.subr.mxu0 0.0
    %435 = vmatpush1.msra.mxu0 0.0
    %436 = vmatprep.subr.mxu0 0.0
    %437 = vmatpush1.msra.mxu0 0.0
    %438 = vmatprep.subr.mxu0 0.0
    %439 = vmatpush1.msra.mxu0 0.0
    %440 = vmatprep.subr.mxu0 0.0
    %441 = vmatpush1.msra.mxu0 0.0
    %442 = vmatprep.subr.mxu0 0.0
    %443 = vmatpush1.msra.mxu0 0.0
    %444 = vmatprep.subr.mxu0 0.0
    %445 = vmatpush1.msra.mxu0 0.0
    %446 = vmatprep.subr.mxu0 0.0
    %447 = vmatpush1.msra.mxu0 0.0
    %448 = vmatprep.subr.mxu0 0.0
    %449 = vmatpush1.msra.mxu0 0.0
    %450 = vmatprep.subr.mxu0 0.0
    %451 = vmatpush1.msra.mxu0 0.0
    %452 = vmatprep.subr.mxu0 0.0
    %453 = vmatpush1.msra.mxu0 0.0
    %454 = vmatprep.subr.mxu0 0.0
    %455 = vmatpush1.msra.mxu0 0.0
    %456 = vmatprep.subr.mxu0 0.0
    %457 = vmatpush1.msra.mxu0 0.0
    %458 = vmatprep.mubr.f32.mxu0 0.0
    %459 = vmatmul.mubr.f32.gmra.mrb[0].mxu0 %v392
    %v460 = vpop.f32.mrb[0].mxu0
    %v461 = vadd.f32 0.0, %v460
    %v462 = vpop.f32.mrb[0].mxu0
    %463 = vdwg.mxu0
    %464 = vxpose.xlu0.b32.start [1/16] %v373, 128
    %465 = vxpose.xlu0.b32.cont [2/16] %v375, 128
    %466 = vxpose.xlu0.b32.cont [3/16] %v377, 128
    %467 = vxpose.xlu0.b32.cont [4/16] %v379, 128
    %468 = vxpose.xlu0.b32.cont [5/16] 0.0, 128
    %469 = vxpose.xlu0.b32.cont [6/16] 0.0, 128
    %470 = vxpose.xlu0.b32.cont [7/16] 0.0, 128
    %471 = vxpose.xlu0.b32.cont [8/16] 0.0, 128
    %472 = vxpose.xlu0.b32.cont [9/16] 0.0, 128
    %473 = vxpose.xlu0.b32.cont [10/16] 0.0, 128
    %474 = vxpose.xlu0.b32.cont [11/16] 0.0, 128
    %475 = vxpose.xlu0.b32.cont [12/16] 0.0, 128
    %476 = vxpose.xlu0.b32.cont [13/16] 0.0, 128
    %477 = vxpose.xlu0.b32.cont [14/16] 0.0, 128
    %478 = vxpose.xlu0.b32.cont [15/16] 0.0, 128
    %479 = vxpose.xlu0.b32.end [16/16] 0.0, 128
    %v480 = vpop.trf.xlu0
    %v481 = vpop.trf.xlu0
    %v482 = vpop.trf.xlu0
    %v483 = vpop.trf.xlu0
    %v484 = vpop.trf.xlu0
    %v485 = vpop.trf.xlu0
    %v486 = vpop.trf.xlu0
    %v487 = vpop.trf.xlu0
    %v488 = vpop.trf.xlu0
    %v489 = vpop.trf.xlu0
    %v490 = vpop.trf.xlu0
    %v491 = vpop.trf.xlu0
    %v492 = vpop.trf.xlu0
    %v493 = vpop.trf.xlu0
    %v494 = vpop.trf.xlu0
    %v495 = vpop.trf.xlu0
    %vm496 = vcmask 261120
    %v498 = vsel %vm496, %v480, 0
    %500 = vmatprep.subr.mxu0 0.0
    %501 = vmatpush1.msra.mxu0 %v385
    %502 = vmatprep.subr.mxu0 0.0
    %503 = vmatpush1.msra.mxu0 %v386
    %504 = vmatprep.subr.mxu0 0.0
    %505 = vmatpush1.msra.mxu0 %v387
    %506 = vmatprep.subr.mxu0 0.0
    %507 = vmatpush1.msra.mxu0 %v388
    %508 = vmatprep.subr.mxu0 0.0
    %509 = vmatpush1.msra.mxu0 0.0
    %510 = vmatprep.subr.mxu0 0.0
    %511 = vmatpush1.msra.mxu0 0.0
    %512 = vmatprep.subr.mxu0 0.0
    %513 = vmatpush1.msra.mxu0 0.0
    %514 = vmatprep.subr.mxu0 0.0
    %515 = vmatpush1.msra.mxu0 0.0
    %516 = vmatprep.subr.mxu0 0.0
    %517 = vmatpush1.msra.mxu0 0.0
    %518 = vmatprep.subr.mxu0 0.0
    %519 = vmatpush1.msra.mxu0 0.0
    %520 = vmatprep.subr.mxu0 0.0
    %521 = vmatpush1.msra.mxu0 0.0
    %522 = vmatprep.subr.mxu0 0.0
    %523 = vmatpush1.msra.mxu0 0.0
    %524 = vmatprep.subr.mxu0 0.0
    %525 = vmatpush1.msra.mxu0 0.0
    %526 = vmatprep.subr.mxu0 0.0
    %527 = vmatpush1.msra.mxu0 0.0
    %528 = vmatprep.subr.mxu0 0.0
    %529 = vmatpush1.msra.mxu0 0.0
    %530 = vmatprep.subr.mxu0 0.0
    %531 = vmatpush1.msra.mxu0 0.0
    %532 = vmatprep.subr.mxu0 0.0
    %533 = vmatpush1.msra.mxu0 0.0
    %534 = vmatprep.subr.mxu0 0.0
    %535 = vmatpush1.msra.mxu0 0.0
    %536 = vmatprep.subr.mxu0 0.0
    %537 = vmatpush1.msra.mxu0 0.0
    %538 = vmatprep.subr.mxu0 0.0
    %539 = vmatpush1.msra.mxu0 0.0
    %540 = vmatprep.subr.mxu0 0.0
    %541 = vmatpush1.msra.mxu0 0.0
    %542 = vmatprep.subr.mxu0 0.0
    %543 = vmatpush1.msra.mxu0 0.0
    %544 = vmatprep.subr.mxu0 0.0
    %545 = vmatpush1.msra.mxu0 0.0
    %546 = vmatprep.subr.mxu0 0.0
    %547 = vmatpush1.msra.mxu0 0.0
    %548 = vmatprep.subr.mxu0 0.0
    %549 = vmatpush1.msra.mxu0 0.0
    %550 = vmatprep.subr.mxu0 0.0
    %551 = vmatpush1.msra.mxu0 0.0
    %552 = vmatprep.subr.mxu0 0.0
    %553 = vmatpush1.msra.mxu0 0.0
    %554 = vmatprep.subr.mxu0 0.0
    %555 = vmatpush1.msra.mxu0 0.0
    %556 = vmatprep.subr.mxu0 0.0
    %557 = vmatpush1.msra.mxu0 0.0
    %558 = vmatprep.subr.mxu0 0.0
    %559 = vmatpush1.msra.mxu0 0.0
    %560 = vmatprep.subr.mxu0 0.0
    %561 = vmatpush1.msra.mxu0 0.0
    %562 = vmatprep.subr.mxu0 0.0
    %563 = vmatpush1.msra.mxu0 0.0
    %564 = vmatprep.mubr.f32.mxu0 0.0
    %565 = vmatmul.mubr.f32.gmra.mrb[0].mxu0 %v498
    %v566 = vpop.f32.mrb[0].mxu0
    %v567 = vadd.f32 %v461, %v566
    %v568 = vpop.f32.mrb[0].mxu0
    %569 = vdwg.mxu0
    %v570 = vld [vmem:[%s7] sm:$0x1]
    %v572 = vlaneseq
    %v573 = vshrl.u32 %v572, 7
    %v574 = vsub.s32 0, %v573
    %v575 = vrot.slane %v570, %v574
    %v577 = vadd.f32 %v567, %v575
    %vm578 = vcmask 33792
    %579 = vst.msk [vmem:[#allocation4] sm:$0x3] %vm578, %v577
    // Predicated region
    $region30: #{tpu_custom_call.1} parent=1 // pred_check
      _
    $region31: #{tpu_custom_call.1} parent=1 // pred_check_branch
      %581 = sbr.rel (0) target = $region33
    $region32: #{tpu_custom_call.1} parent=1 // pred_region
      %s583 = ssub.s32 32, 32
      %584 = vsyncadd [#allocation5], %s583
      %s586 = sshll.u32 [#allocation4], 4
      %s587 = int_to_ptr.vmem [resolvable:$true] %s586
      %589 = dma.vmem_to_hbm [thread:$0]  %s587, 32, %s8, [#allocation5]
    $region33: #{tpu_custom_call.1} parent=1 // pred_fallthru
      _
    // Predicated region
    $region34: #{tpu_custom_call.1} parent=1 // pred_check
      _
    $region35: #{tpu_custom_call.1} parent=1 // pred_check_branch
      %591 = sbr.rel (0) target = $region37
    $region36: #{tpu_custom_call.1} parent=1 // pred_region
      %592 = dma.done [#allocation5], 32
    $region37: #{tpu_custom_call.1} parent=1 // pred_fallthru
      _
    %593 = vsyncpa [#allocation5], 1

</llo_original>
